<compile_context>
chip_gen: v5e
topology: v5e:2x2
jax: 0.10.0
libtpu: 0.0.40
codegen_flags: <defaults>
</compile_context>

<pallas_src>
import functools
import math

import numpy as np
import jax
import jax.numpy as jnp
from jax import lax
from jax.experimental import pallas as pl
from jax.experimental.pallas import tpu as pltpu

BINS = 256
BIN_CHUNK = 128            # bins per inner chunk (one 128-lane row of counts)
SEG = 256                  # <=256 so 0/1 partial sums stay exact in bf16
WIN = 3                    # win_w == win_h == 3 (odd patch -> calcIJ_new center branch)
VMEM_LIMIT = 32 * 1024 * 1024   # scoped VMEM: <= v7x 64 MiB phys, >= v6e/v7x default, > v5e 16 MiB
KERNEL_A_LIVE_BLOCKS = 12       # 2x in + 2x out double-buffers + ~8 live temporaries


def _round_up(n, m):
    return ((n + m - 1) // m) * m


# ----------------------------------------------------------------------------
# Kernel A: 3x3 zero-padded box sum -> ij = center*100 + mean(8 neighbours),
#           lane-dense (tile_bc, H*W) blocks, fused per-block min/max.
# ----------------------------------------------------------------------------
def _ij_kernel(x_ref, mask_ref, ij_ref, mm_ref, *, W):
    x = x_ref[...]                                   # (TB, HW) f32, lane-dense
    TB, HW = x.shape
    z1 = jnp.zeros((TB, 1), jnp.float32)
    zW = jnp.zeros((TB, W), jnp.float32)
    m_right = mask_ref[0:1, :]                       # 1.0 where a right neighbour exists
    m_left = mask_ref[1:2, :]                        # 1.0 where a left  neighbour exists

    # Separable 3x3 zero-padded box sum on the flat row-major layout.
    right = jnp.concatenate([x[:, 1:], z1], axis=1) * m_right     # x[i, j+1]
    left = jnp.concatenate([z1, x[:, :-1]], axis=1) * m_left      # x[i, j-1]
    hsum = x + right + left
    down = jnp.concatenate([hsum[:, W:], zW], axis=1)             # hsum[i+1, j] (zeros past last row)
    up = jnp.concatenate([zW, hsum[:, :-W]], axis=1)              # hsum[i-1, j] (zeros before first row)
    s = hsum + down + up

    # calcIJ_new: center_p * 100 + (patch_sum - center_p) / (total_p - 1)
    ij = x * 100.0 + (s - x) * 0.125
    ij_ref[...] = ij

    # Fused per-block min / max (shared torch.histc range); keepdims everywhere
    # (no rank-0 vectors on TPU), computed on data already in VMEM.
    mn = jnp.min(jnp.min(ij, axis=1, keepdims=True), axis=0, keepdims=True)   # (1, 1)
    mx = jnp.max(jnp.max(ij, axis=1, keepdims=True), axis=0, keepdims=True)   # (1, 1)
    mm_ref[...] = jnp.concatenate([mn, mx], axis=1)[None]                     # (1, 1, 2)


def _pick_channel_tile(BC, HW):
    # Size the channel tile from the *padded* per-channel VMEM footprint
    # (lane dim rounded to 128), times the live-buffer multiplier.
    padded_row_bytes = _round_up(HW, 128) * 4
    budget = VMEM_LIMIT * 3 // 4                     # leave scheduler headroom
    cap = max(1, budget // (KERNEL_A_LIVE_BLOCKS * padded_row_bytes))
    if BC >= 16:
        cap = min(cap, BC // 2)                      # >= 2 grid steps (v7x megacore / pipelining)
    best_fallback = None
    for t in range(min(cap, BC), 0, -1):
        if BC % t:
            continue
        if t % 8 == 0 or t == BC:                    # sublane-aligned or full-extent block
            return t
        if best_fallback is None:
            best_fallback = t
    return best_fallback or 1


def compute_ij(img_flat, masks, W):
    BC, HW = img_flat.shape
    tile_bc = _pick_channel_tile(BC, HW)
    nb = BC // tile_bc
    # TODO(synk): very large H*W (single-channel block > ~2 MiB) would additionally
    # need spatial tiling with a halo exchange; not required at these sizes.
    ij, mm = pl.pallas_call(
        functools.partial(_ij_kernel, W=W),
        grid=(nb,),
        in_specs=[
            pl.BlockSpec((tile_bc, HW), lambda i: (i, 0)),
            pl.BlockSpec((2, HW), lambda i: (0, 0)),          # constant boundary masks
        ],
        out_specs=[
            pl.BlockSpec((tile_bc, HW), lambda i: (i, 0)),    # lane-dense ij
            pl.BlockSpec((1, 1, 2), lambda i: (i, 0, 0)),     # per-block [min, max]
        ],
        out_shape=[
            jax.ShapeDtypeStruct((BC, HW), jnp.float32),
            jax.ShapeDtypeStruct((nb, 1, 2), jnp.float32),
        ],
        compiler_params=pltpu.CompilerParams(
            dimension_semantics=("parallel",),
            vmem_limit_bytes=VMEM_LIMIT),
    )(img_flat, masks)
    return ij, mm


# ----------------------------------------------------------------------------
# Kernel B: tiled per-row 256-bin histogram (torch.histc semantics, shared
#           range) + per-row Shannon entropy, counts accumulator in VMEM.
# ----------------------------------------------------------------------------
def _hist_entropy_kernel(ls_ref, ij_ref, ent_ref, counts_ref, *, inv_area, use_bf16):
    lane_step = pl.program_id(1)

    @pl.when(lane_step == 0)
    def _init():
        counts_ref[...] = jnp.zeros_like(counts_ref)

    lo = ls_ref[0]                                   # precomputed in wrapper (SMEM)
    scale = ls_ref[1]                                # BINS / range (degenerate-safe)

    x = ij_ref[...]                                  # (tile_r, tile_l) f32
    tile_r, tile_l = x.shape
    cmp_dtype = jnp.bfloat16 if use_bf16 else jnp.float32
    # Bin index as an exact small integer (0..255) in the compare dtype
    # (integers <= 255 are exact in bf16).
    bin_f = jnp.minimum(jnp.floor((x - lo) * scale), float(BINS - 1))
    bin_c = bin_f.astype(cmp_dtype)

    # Bin-on-lanes one-hot: (tile_r, seg, BIN_CHUNK), reduce over sublanes
    # (axis=1) so the partial already matches counts_ref[:, c0:c0+BIN_CHUNK].
    for c0 in range(0, BINS, BIN_CHUNK):
        bins = (c0 + lax.broadcasted_iota(jnp.int32, (1, 1, BIN_CHUNK), 2)
                ).astype(jnp.float32).astype(cmp_dtype)
        acc = jnp.zeros((tile_r, BIN_CHUNK), jnp.float32)
        for s0 in range(0, tile_l, SEG):
            seg = bin_c[:, s0:s0 + min(SEG, tile_l - s0)]
            onehot = (seg[:, :, None] == bins).astype(cmp_dtype)
            acc = acc + jnp.sum(onehot, axis=1).astype(jnp.float32)
        counts_ref[:, c0:c0 + BIN_CHUNK] += acc

    @pl.when(lane_step == pl.num_programs(1) - 1)
    def _finalize():
        p = counts_ref[...] * inv_area
        # torch clamps p at 1e-40 (subnormal in f32, flushed on TPU); clamp at
        # 1e-30 instead — identical result since p is 0 or >= inv_area.
        h = -p * jnp.log(jnp.maximum(p, 1e-30)) * (1.0 / math.log(2.0))
        ent_ref[...] = jnp.sum(h, axis=1, keepdims=True)


def _pick_row_tile(bc):
    for t in (32, 16, 8):                  # multiple of 8, keep >= 2 row steps
        if bc % t == 0 and bc // t >= 2:
            return t
    if bc % 8 == 0:
        return 8
    return bc                              # full-extent fallback


def _pick_lane_tile(hw):
    for t in (1024, 512, 384, 256, 128):   # multiples of 128, big first
        if hw % t == 0:
            return t
    return hw                              # full-extent fallback


def _use_bf16_compare():
    # bf16 VALU exists on v6e / v7x; fall back to f32 elsewhere (always exact).
    try:
        kind = jax.devices()[0].device_kind.lower()
    except Exception:
        return False
    return any(tag in kind for tag in ("v6", "v7", "7x"))


def compute_entropy(lo_scale, ij_flat, inv_area):
    BC, HW = ij_flat.shape
    tile_r = _pick_row_tile(BC)
    tile_l = _pick_lane_tile(HW)
    return pl.pallas_call(
        functools.partial(_hist_entropy_kernel, inv_area=inv_area,
                          use_bf16=_use_bf16_compare()),
        grid=(BC // tile_r, HW // tile_l),
        in_specs=[
            pl.BlockSpec(memory_space=pltpu.MemorySpace.SMEM),     # [lo, scale]
            pl.BlockSpec((tile_r, tile_l), lambda r, l: (r, l)),   # ij tile
        ],
        out_specs=pl.BlockSpec((tile_r, 1), lambda r, l: (r, 0)),
        out_shape=jax.ShapeDtypeStruct((BC, 1), jnp.float32),
        scratch_shapes=[pltpu.VMEM((tile_r, BINS), jnp.float32)],
        compiler_params=pltpu.CompilerParams(
            dimension_semantics=("parallel", "arbitrary"),
            vmem_limit_bytes=VMEM_LIMIT),
    )(lo_scale, ij_flat)


# ----------------------------------------------------------------------------
# Kernel C: gather top-k channels per batch (index_select) via scalar-prefetch
#           data-dependent BlockSpec, lane-dense blocks, both axes parallel.
# ----------------------------------------------------------------------------
def _gather_kernel(idx_ref, x_ref, o_ref):
    del idx_ref
    o_ref[...] = x_ref[...]


def gather_channels(img, index):
    B, C, H, W = img.shape
    k = index.shape[1]
    HW = H * W
    if HW % 128 == 0:
        S = HW // 128
        src = img.reshape(B, C, S, 128)
        grid_spec = pltpu.PrefetchScalarGridSpec(
            num_scalar_prefetch=1,
            grid=(B, k),
            in_specs=[pl.BlockSpec(
                (1, 1, S, 128), lambda b, j, idx_ref: (b, idx_ref[b, j], 0, 0))],
            out_specs=pl.BlockSpec(
                (1, 1, S, 128), lambda b, j, idx_ref: (b, j, 0, 0)),
        )
        out = pl.pallas_call(
            _gather_kernel,
            grid_spec=grid_spec,
            out_shape=jax.ShapeDtypeStruct((B, k, S, 128), img.dtype),
            compiler_params=pltpu.CompilerParams(
                dimension_semantics=("parallel", "parallel")),
        )(index, src)
        return out.reshape(B, k, H, W)
    # Fallback (HW not a multiple of 128): flat per-channel blocks — one fat
    # DMA per channel instead of H thin rows.
    src = img.reshape(B, C, HW)
    grid_spec = pltpu.PrefetchScalarGridSpec(
        num_scalar_prefetch=1,
        grid=(B, k),
        in_specs=[pl.BlockSpec(
            (1, 1, HW), lambda b, j, idx_ref: (b, idx_ref[b, j], 0))],
        out_specs=pl.BlockSpec(
            (1, 1, HW), lambda b, j, idx_ref: (b, j, 0)),
    )
    out = pl.pallas_call(
        _gather_kernel,
        grid_spec=grid_spec,
        out_shape=jax.ShapeDtypeStruct((B, k, HW), img.dtype),
        compiler_params=pltpu.CompilerParams(
            dimension_semantics=("parallel", "parallel")),
    )(index, src)
    return out.reshape(B, k, H, W)


# ----------------------------------------------------------------------------
# Forward pass == Entropy_Hist.forward
# ----------------------------------------------------------------------------
def _make_col_masks(H, W):
    col = np.arange(H * W, dtype=np.int64) % W
    m_right = (col != (W - 1)).astype(np.float32)     # right neighbour exists
    m_left = (col != 0).astype(np.float32)            # left  neighbour exists
    return jnp.asarray(np.stack([m_right, m_left], axis=0))     # (2, HW)


def entropy_hist_forward(img, ratio):
    B, C, H, W = img.shape
    k = int(ratio * C)
    BC, HW = B * C, H * W
    img_flat = img.astype(jnp.float32).reshape(BC, HW)

    masks = _make_col_masks(H, W)
    ij, mm = compute_ij(img_flat, masks, W)           # (BC, HW), (nb, 1, 2)

    # Shared torch.histc range from the fused per-block partials; degenerate
    # (min == max) fallback widens the range by 1 per side.  Hoisted out of
    # Kernel B and passed as two SMEM scalars.
    mn = jnp.min(mm[:, 0, 0])
    mx = jnp.max(mm[:, 0, 1])
    degen = mx <= mn
    lo = jnp.where(degen, mn - 1.0, mn)
    rng = jnp.where(degen, jnp.float32(2.0), mx - mn)
    scale = jnp.float32(BINS) / rng
    lo_scale = jnp.stack([lo, scale]).astype(jnp.float32)        # (2,)

    inv_area = 1.0 / float((W + 2) * (H + 2))         # new_width * new_height (torch quirk)
    ent = compute_entropy(lo_scale, ij, inv_area)     # (BC, 1)
    H_mat = ent.reshape(B, C)

    _, index = lax.top_k(H_mat, k)                    # like torch.topk
    index = index.astype(jnp.int32)

    selected = gather_channels(img, index)            # (B, k, H, W)
    return selected, H_mat, index


# ----------------------------------------------------------------------------
# Pure-JAX reference (same math & association order) for a sanity check.
# ----------------------------------------------------------------------------
def reference_entropy(img):
    B, C, H, W = img.shape
    x = img.astype(jnp.float32)
    zc = jnp.zeros((B, C, H, 1), jnp.float32)
    right = jnp.concatenate([x[..., 1:], zc], axis=3)       # x[i, j+1]
    left = jnp.concatenate([zc, x[..., :-1]], axis=3)       # x[i, j-1]
    hsum = x + right + left
    zr = jnp.zeros((B, C, 1, W), jnp.float32)
    down = jnp.concatenate([hsum[..., 1:, :], zr], axis=2)  # hsum[i+1, j]
    up = jnp.concatenate([zr, hsum[..., :-1, :]], axis=2)   # hsum[i-1, j]
    s = hsum + down + up
    ij = (x * 100.0 + (s - x) * 0.125).reshape(B * C, H * W)
    mn, mx = jnp.min(ij), jnp.max(ij)
    scale = jnp.float32(BINS) / (mx - mn)
    idx = jnp.minimum(jnp.floor((ij - mn) * scale), float(BINS - 1))
    counts = jnp.sum(
        (idx[:, :, None] ==
         jnp.arange(BINS, dtype=jnp.float32)[None, None, :]).astype(jnp.float32),
        axis=1)
    p = counts * (1.0 / float((W + 2) * (H + 2)))
    h = -p * jnp.log(jnp.maximum(p, 1e-30)) * (1.0 / math.log(2.0))
    return jnp.sum(h, axis=1).reshape(B, C)


if __name__ == "__main__":
    key = jax.random.PRNGKey(0)
    # B*C = 16 so the original histc_fork's view(N=16, ...) split is well-defined.
    B, C, H, W = 2, 8, 16, 16
    ratio = 0.5
    img = jax.random.uniform(key, (B, C, H, W), dtype=jnp.float32)

    selected, H_mat, index = entropy_hist_forward(img, ratio)
    selected = jax.block_until_ready(selected)

    # sanity checks
    assert selected.shape == (B, int(ratio * C), H, W)
    H_ref = reference_entropy(img)
    assert jnp.allclose(H_mat, H_ref, atol=1e-3, rtol=1e-3), "entropy mismatch"
    ref_sel = jnp.take_along_axis(img, index[:, :, None, None], axis=1)
    assert jnp.allclose(selected, ref_sel), "gather mismatch"

    print("KERNEL_OK")
</pallas_src>

<mosaic_0001>
module attributes {stable_mosaic.version = 11 : i64} {
  func.func @_ij_kernel(%arg0: i32, %arg1: memref<8x256xf32, #tpu.memory_space<vmem>>, %arg2: memref<2x256xf32, #tpu.memory_space<vmem>>, %arg3: memref<8x256xf32, #tpu.memory_space<vmem>>, %arg4: memref<1x1x2xf32, #tpu.memory_space<vmem>>) attributes {dimension_semantics = [#tpu.dimension_semantics<parallel>], iteration_bounds = array<i64: 2>, scalar_prefetch = 0 : i64, scratch_operands = 0 : i64, tpu.core_type = #tpu.core_type<tc>, window_params = [{transform_indices = @transform_0, window_bounds = array<i64: 8, 256>}, {pipeline_mode = #tpu.pipeline_mode<synchronous>, transform_indices = @transform_1, window_bounds = array<i64: 2, 256>}, {transform_indices = @transform_2, window_bounds = array<i64: 8, 256>}, {transform_indices = @transform_3, window_bounds = array<i64: 1, 1, 2>}]} {
    %c0 = arith.constant 0 : index
    %c0_0 = arith.constant 0 : index
    %0 = vector.load %arg1[%c0, %c0_0] : memref<8x256xf32, #tpu.memory_space<vmem>>, vector<8x256xf32>
    %cst = arith.constant 0.000000e+00 : f32
    %1 = vector.broadcast %cst : f32 to vector<8x1xf32>
    %cst_1 = arith.constant 0.000000e+00 : f32
    %2 = vector.broadcast %cst_1 : f32 to vector<8x16xf32>
    %c0_2 = arith.constant 0 : index
    %c0_3 = arith.constant 0 : index
    %3 = vector.load %arg2[%c0_2, %c0_3] : memref<2x256xf32, #tpu.memory_space<vmem>>, vector<1x256xf32>
    %c1 = arith.constant 1 : index
    %c0_4 = arith.constant 0 : index
    %4 = vector.load %arg2[%c1, %c0_4] : memref<2x256xf32, #tpu.memory_space<vmem>>, vector<1x256xf32>
    %5 = vector.extract_strided_slice %0 {offsets = [0, 1], sizes = [8, 255], strides = [1, 1]} : vector<8x256xf32> to vector<8x255xf32>
    %6 = tpu.concatenate %5, %1 in 1 : vector<8x255xf32>, vector<8x1xf32> -> vector<8x256xf32>
    %7 = vector.broadcast %3 : vector<1x256xf32> to vector<8x256xf32>
    %8 = arith.mulf %6, %7 : vector<8x256xf32>
    %9 = vector.extract_strided_slice %0 {offsets = [0, 0], sizes = [8, 255], strides = [1, 1]} : vector<8x256xf32> to vector<8x255xf32>
    %10 = tpu.concatenate %1, %9 in 1 : vector<8x1xf32>, vector<8x255xf32> -> vector<8x256xf32>
    %11 = vector.broadcast %4 : vector<1x256xf32> to vector<8x256xf32>
    %12 = arith.mulf %10, %11 : vector<8x256xf32>
    %13 = arith.addf %0, %8 : vector<8x256xf32>
    %14 = arith.addf %13, %12 : vector<8x256xf32>
    %15 = vector.extract_strided_slice %14 {offsets = [0, 16], sizes = [8, 240], strides = [1, 1]} : vector<8x256xf32> to vector<8x240xf32>
    %16 = tpu.concatenate %15, %2 in 1 : vector<8x240xf32>, vector<8x16xf32> -> vector<8x256xf32>
    %17 = vector.extract_strided_slice %14 {offsets = [0, 0], sizes = [8, 240], strides = [1, 1]} : vector<8x256xf32> to vector<8x240xf32>
    %18 = tpu.concatenate %2, %17 in 1 : vector<8x16xf32>, vector<8x240xf32> -> vector<8x256xf32>
    %19 = arith.addf %14, %16 : vector<8x256xf32>
    %20 = arith.addf %19, %18 : vector<8x256xf32>
    %cst_5 = arith.constant 1.000000e+02 : f32
    %21 = vector.broadcast %cst_5 : f32 to vector<8x256xf32>
    %22 = arith.mulf %0, %21 : vector<8x256xf32>
    %23 = arith.subf %20, %0 : vector<8x256xf32>
    %cst_6 = arith.constant 1.250000e-01 : f32
    %24 = vector.broadcast %cst_6 : f32 to vector<8x256xf32>
    %25 = arith.mulf %23, %24 : vector<8x256xf32>
    %26 = arith.addf %22, %25 : vector<8x256xf32>
    %c0_7 = arith.constant 0 : index
    %c0_8 = arith.constant 0 : index
    %27 = vector.load %arg3[%c0_7, %c0_8] : memref<8x256xf32, #tpu.memory_space<vmem>>, vector<8x256xf32>
    tpu.vector_store %arg3[%c0_7, %c0_8], %26 {strides = array<i32>} : memref<8x256xf32, #tpu.memory_space<vmem>>, vector<8x256xf32>,
    %cst_9 = arith.constant dense<0x7F800000> : vector<8xf32>
    %28 = vector.multi_reduction <minimumf>, %26, %cst_9 [1] : vector<8x256xf32> to vector<8xf32>
    %29 = vector.shape_cast %28 : vector<8xf32> to vector<8x1xf32>
    %cst_10 = arith.constant dense<0x7F800000> : vector<1xf32>
    %30 = vector.multi_reduction <minimumf>, %29, %cst_10 [0] : vector<8x1xf32> to vector<1xf32>
    %31 = vector.shape_cast %30 : vector<1xf32> to vector<1x1xf32>
    %cst_11 = arith.constant dense<0xFF800000> : vector<8xf32>
    %32 = vector.multi_reduction <maximumf>, %26, %cst_11 [1] : vector<8x256xf32> to vector<8xf32>
    %33 = vector.shape_cast %32 : vector<8xf32> to vector<8x1xf32>
    %cst_12 = arith.constant dense<0xFF800000> : vector<1xf32>
    %34 = vector.multi_reduction <maximumf>, %33, %cst_12 [0] : vector<8x1xf32> to vector<1xf32>
    %35 = vector.shape_cast %34 : vector<1xf32> to vector<1x1xf32>
    %36 = tpu.concatenate %31, %35 in 1 : vector<1x1xf32>, vector<1x1xf32> -> vector<1x2xf32>
    %37 = vector.shape_cast %36 : vector<1x2xf32> to vector<1x1x2xf32>
    %c0_13 = arith.constant 0 : index
    %c0_14 = arith.constant 0 : index
    %c0_15 = arith.constant 0 : index
    %38 = vector.load %arg4[%c0_13, %c0_14, %c0_15] : memref<1x1x2xf32, #tpu.memory_space<vmem>>, vector<1x1x2xf32>
    tpu.vector_store %arg4[%c0_13, %c0_14, %c0_15], %37 {strides = array<i32>} : memref<1x1x2xf32, #tpu.memory_space<vmem>>, vector<1x1x2xf32>,
    return
  }
  func.func @transform_0(%arg0: i32) -> (i32, i32) {
    %c0_i32 = arith.constant 0 : i32
    %c0_i32_0 = arith.constant 0 : i32
    return %arg0, %c0_i32 : i32, i32
  }
  func.func @transform_1(%arg0: i32) -> (i32, i32) {
    %c0_i32 = arith.constant 0 : i32
    %c0_i32_0 = arith.constant 0 : i32
    %c0_i32_1 = arith.constant 0 : i32
    return %c0_i32, %c0_i32_0 : i32, i32
  }
  func.func @transform_2(%arg0: i32) -> (i32, i32) {
    %c0_i32 = arith.constant 0 : i32
    %c0_i32_0 = arith.constant 0 : i32
    return %arg0, %c0_i32 : i32, i32
  }
  func.func @transform_3(%arg0: i32) -> (i32, i32, i32) {
    %c0_i32 = arith.constant 0 : i32
    %c0_i32_0 = arith.constant 0 : i32
    %c0_i32_1 = arith.constant 0 : i32
    return %arg0, %c0_i32, %c0_i32_0 : i32, i32, i32
  }
}

</mosaic_0001>

<llo_original>
// kernel: tpu_custom_call.1
$region0: #{tpu_custom_call.1}
  #allocation0 [shape = 'u32[]', space=smem, size = 0x4, offset = 0x4, fixed_abs, tag = 'smem constant byte address 0x4 - core index']
  #allocation1 [shape = 'u32[72,128]{1,0:T(1,128)}', space=vmem, size = 0x9000, scoped, tag = 'internal scratch']
  %s0 = inlined_call_operand.hbm [shape: f32[16,256], index: 0, kind: input, shape index: {}]
  %s1 = inlined_call_operand.hbm [shape: f32[2,256], index: 1, kind: input, shape index: {}]
  %s2 = inlined_call_operand.hbm [shape: f32[16,256], index: 2, kind: output, shape index: {0}]
  %s3 = inlined_call_operand.hbm [shape: f32[2,1,2], index: 3, kind: output, shape index: {1}]
  %4 = xla_tuple %s2, %s3
  %s5 = sld [smem:[#allocation0]]
  $region57: #{tpu_custom_call.1} parent=0
    _
  %s7 = ssub.s32 1, %s5
  %s8 = scalar_select 0, %s7, %s5
  $region1: #{tpu_custom_call.1} parent=0
    #allocation2 [shape = 'u8[16384]{0}', space=vmem, size = 0x4000, scoped, tag = 'input window, operand 0']
    #allocation3 [shape = 's32[2]{0}', space=sflag, size = 0x8, scoped, tag = 'scoped memory for tpu_custom_call.1']
    #allocation4 [shape = 's32[2]{0}', space=sflag, size = 0x8, scoped, tag = 'scoped memory for tpu_custom_call.1']
    #allocation5 [shape = 'u8[2048]{0}', space=vmem, size = 0x800, scoped, tag = 'input window, operand 1, single buffered']
    #allocation6 [shape = 's32[1]{0}', space=sflag, size = 0x4, scoped, tag = 'scoped memory for tpu_custom_call.1']
    #allocation7 [shape = 'u8[16384]{0}', space=vmem, size = 0x4000, scoped, tag = 'output window, operand 0']
    #allocation8 [shape = 'u8[1024]{0}', space=vmem, size = 0x400, scoped, tag = 'output window, operand 1']
    #allocation9 [shape = 's32[2]{0}', space=sflag, size = 0x8, scoped, tag = 'scoped memory for tpu_custom_call.1']
    %9 = vsyncpa [#allocation3], 0
    %s10 = scalar_lea.sflag [#allocation3], 1
    %11 = vsyncpa %s10, 0
    %12 = vsyncpa [#allocation6], 0
    %13 = vsyncpa [#allocation4], 0
    %s14 = scalar_lea.sflag [#allocation4], 1
    %15 = vsyncpa %s14, 0
    %16 = vsyncpa [#allocation9], 0
    %s17 = scalar_lea.sflag [#allocation9], 1
    %18 = vsyncpa %s17, 0
    loop: start=0, step=1, limit=4
    $region2: #{tpu_custom_call.1} parent=1 // loop_pre_header
      _
    $region3: #{tpu_custom_call.1} parent=1 // loop_header
      %s20 = sphi 0, %s24
      %p21 = scmp.ge.s32.totalorder %s20, 4
      %s30 = sphi 0, %s32
      %s33 = sphi 0, %s30
      %s34 = sphi 0, %s33
      %s50 = sphi 0, %s34
      %s54 = sphi 0, %s54
      %s56 = sphi 0, %s54
      %s57 = sphi 0, %s56
      %s71 = sphi 0, %s57
      %s77 = sphi 0, %s79
      %s80 = sphi 0, %s77
      %s81 = sphi 0, %s80
      %s97 = sphi 0, %s81
      %s103 = sphi 0, %s105
      %s106 = sphi 0, %s103
      %s107 = sphi 0, %s106
      %s123 = sphi 0, %s107
    $region4: #{tpu_custom_call.1} parent=1 // loop_header_branch
      %23 = sbr.rel (%p21) target = $region8
    $region5: #{tpu_custom_call.1} parent=1 // loop_body
      %s25 = ssub.s32 %s20, 1
      %s26 = ssub.s32 %s20, 2
      %s27 = sadd.s32 %s20, 1
      %s28 = ssub.s32 %s20, %s27
      %p29 = scmp.eq.s32.totalorder %s28, 0
      %s31 = sadd.s32 %s30, 1
      %s32 = scalar_select %p29, %s30, %s31
      %p35 = pneg %p29
      %p36 = scmp.eq.s32.totalorder %s20, 1
      %p37 = por %p35, %p36
      %p38 = scmp.ne.s32.totalorder %s30, %s33
      %p39 = scmp.eq.s32.totalorder %s20, 0
      %p40 = por %p38, %p39
      %p41 = scmp.ne.s32.totalorder %s30, %s33
      %p42 = scmp.eq.s32.totalorder %s25, 1
      %p43 = por %p41, %p42
      %p44 = scmp.ne.s32.totalorder %s33, %s34
      %p45 = scmp.eq.s32.totalorder %s25, 0
      %p46 = por %p44, %p45
      %p47 = scmp.ne.s32.totalorder %s33, %s34
      %p48 = scmp.eq.s32.totalorder %s26, 1
      %p49 = por %p47, %p48
      %p51 = scmp.ne.s32.totalorder %s34, %s50
      %p52 = scmp.eq.s32.totalorder %s26, 0
      %p53 = por %p51, %p52
      %s55 = sadd.s32 %s54, 1
      %p58 = scmp.eq.s32.totalorder %s20, 1
      %p59 = scmp.ne.s32.totalorder %s54, %s56
      %p60 = scmp.eq.s32.totalorder %s20, 0
      %p61 = por %p59, %p60
      %p62 = scmp.ne.s32.totalorder %s54, %s56
      %p63 = scmp.eq.s32.totalorder %s25, 1
      %p64 = por %p62, %p63
      %p65 = scmp.ne.s32.totalorder %s56, %s57
      %p66 = scmp.eq.s32.totalorder %s25, 0
      %p67 = por %p65, %p66
      %p68 = scmp.ne.s32.totalorder %s56, %s57
      %p69 = scmp.eq.s32.totalorder %s26, 1
      %p70 = por %p68, %p69
      %p72 = scmp.ne.s32.totalorder %s57, %s71
      %p73 = scmp.eq.s32.totalorder %s26, 0
      %p74 = por %p72, %p73
      %s75 = ssub.s32 %s20, %s27
      %p76 = scmp.eq.s32.totalorder %s75, 0
      %s78 = sadd.s32 %s77, 1
      %s79 = scalar_select %p76, %s77, %s78
      %p82 = pneg %p76
      %p83 = scmp.eq.s32.totalorder %s20, 1
      %p84 = por %p82, %p83
      %p85 = scmp.ne.s32.totalorder %s77, %s80
      %p86 = scmp.eq.s32.totalorder %s20, 0
      %p87 = por %p85, %p86
      %p88 = scmp.ne.s32.totalorder %s77, %s80
      %p89 = scmp.eq.s32.totalorder %s25, 1
      %p90 = por %p88, %p89
      %p91 = scmp.ne.s32.totalorder %s80, %s81
      %p92 = scmp.eq.s32.totalorder %s25, 0
      %p93 = por %p91, %p92
      %p94 = scmp.ne.s32.totalorder %s80, %s81
      %p95 = scmp.eq.s32.totalorder %s26, 1
      %p96 = por %p94, %p95
      %p98 = scmp.ne.s32.totalorder %s81, %s97
      %p99 = scmp.eq.s32.totalorder %s26, 0
      %p100 = por %p98, %p99
      %s101 = ssub.s32 %s20, %s27
      %p102 = scmp.eq.s32.totalorder %s101, 0
      %s104 = sadd.s32 %s103, 1
      %s105 = scalar_select %p102, %s103, %s104
      %p108 = pneg %p102
      %p109 = scmp.eq.s32.totalorder %s20, 1
      %p110 = por %p108, %p109
      %p111 = scmp.ne.s32.totalorder %s103, %s106
      %p112 = scmp.eq.s32.totalorder %s20, 0
      %p113 = por %p111, %p112
      %p114 = scmp.ne.s32.totalorder %s103, %s106
      %p115 = scmp.eq.s32.totalorder %s25, 1
      %p116 = por %p114, %p115
      %p117 = scmp.ne.s32.totalorder %s106, %s107
      %p118 = scmp.eq.s32.totalorder %s25, 0
      %p119 = por %p117, %p118
      %p120 = scmp.ne.s32.totalorder %s106, %s107
      %p121 = scmp.eq.s32.totalorder %s26, 1
      %p122 = por %p120, %p121
      %p124 = scmp.ne.s32.totalorder %s107, %s123
      %p125 = scmp.eq.s32.totalorder %s26, 0
      %p126 = por %p124, %p125
      %p127 = scmp.le.s32.totalorder 1, %s20
      %p128 = scmp.lt.s32.totalorder %s20, 3
      %p129 = pnand %p127, %p128
      %p130 = pneg %p129
      // Predicated region
      $region9: #{tpu_custom_call.1} parent=5 // pred_check
        _
      $region10: #{tpu_custom_call.1} parent=5 // pred_check_branch
        %132 = sbr.rel (%p129) target = $region12
      $region11: #{tpu_custom_call.1} parent=5 // pred_region
        %s133 = ssub.s32 %s20, 1
        // Predicated region
        $region13: #{tpu_custom_call.1} parent=11 // pred_check
          %p134 = pneg %p67
        $region14: #{tpu_custom_call.1} parent=11 // pred_check_branch
          %136 = sbr.rel (%p134) target = $region16
        $region15: #{tpu_custom_call.1} parent=11 // pred_region
          %138 = vsyncadd [#allocation6], 0
          %s140 = sshll.u32 %s1, 4
          %s141 = int_to_ptr.hbm [resolvable:$true] %s140
          %s142 = sshll.u32 [#allocation5], 4
          %s143 = int_to_ptr.vmem [resolvable:$true] %s142
          %145 = dma.hbm_to_vmem [thread:$0]  %s141, 64, %s143, [#allocation6]
        $region16: #{tpu_custom_call.1} parent=11 // pred_fallthru
          _
      $region12: #{tpu_custom_call.1} parent=5 // pred_fallthru
        _
      %p146 = scmp.lt.s32.totalorder %s20, 2
      // Predicated region
      $region17: #{tpu_custom_call.1} parent=5 // pred_check
        %p147 = pneg %p146
      $region18: #{tpu_custom_call.1} parent=5 // pred_check_branch
        %149 = sbr.rel (%p147) target = $region20
      $region19: #{tpu_custom_call.1} parent=5 // pred_region
        // Predicated region
        $region21: #{tpu_custom_call.1} parent=19 // pred_check
          %p150 = pneg %p40
        $region22: #{tpu_custom_call.1} parent=19 // pred_check_branch
          %152 = sbr.rel (%p150) target = $region24
        $region23: #{tpu_custom_call.1} parent=19 // pred_region
          %s153 = sand.u32 %s30, 1
          %s154 = scalar_lea.sflag [#allocation3], %s153
          %s155 = sand.u32 %s30, 1
          %s156 = smul.addr %s155, 16
          %s157 = scalar_lea.vmem [#allocation2], %s156
          %159 = vsyncadd %s154, 0
          %s160 = smul.addr %s20, 2
          %s161 = smul.addr %s160, 8
          %s162 = scalar_lea.hbm %s0, %s161
          %s164 = sshll.u32 %s162, 4
          %s165 = int_to_ptr.hbm [resolvable:$true] %s164
          %s166 = sshll.u32 %s157, 4
          %s167 = int_to_ptr.vmem [resolvable:$true] %s166
          %169 = dma.hbm_to_vmem [thread:$0]  %s165, 256, %s167, %s154
        $region24: #{tpu_custom_call.1} parent=19 // pred_fallthru
          _
      $region20: #{tpu_custom_call.1} parent=5 // pred_fallthru
        _
      %p170 = scmp.le.s32.totalorder 1, %s20
      %p171 = scmp.lt.s32.totalorder %s20, 3
      %p172 = pnand %p170, %p171
      %p173 = pneg %p172
      // Predicated region
      $region25: #{tpu_custom_call.1} parent=5 // pred_check
        _
      $region26: #{tpu_custom_call.1} parent=5 // pred_check_branch
        %175 = sbr.rel (%p172) target = $region28
      $region27: #{tpu_custom_call.1} parent=5 // pred_region
        %s176 = ssub.s32 %s20, 1
        %s177 = sand.u32 %s33, 1
        %s178 = scalar_lea.sflag [#allocation3], %s177
        %s179 = sand.u32 %s33, 1
        %s180 = smul.addr %s179, 16
        %s181 = scalar_lea.vmem [#allocation2], %s180
        // Predicated region
        $region29: #{tpu_custom_call.1} parent=27 // pred_check
          %p182 = pneg %p46
        $region30: #{tpu_custom_call.1} parent=27 // pred_check_branch
          %184 = sbr.rel (%p182) target = $region32
        $region31: #{tpu_custom_call.1} parent=27 // pred_region
          %186 = dma.done %s178, 256
        $region32: #{tpu_custom_call.1} parent=27 // pred_fallthru
          _
        // Predicated region
        $region33: #{tpu_custom_call.1} parent=27 // pred_check
          %p187 = pneg %p67
        $region34: #{tpu_custom_call.1} parent=27 // pred_check_branch
          %189 = sbr.rel (%p187) target = $region36
        $region35: #{tpu_custom_call.1} parent=27 // pred_region
          %191 = dma.done [#allocation6], 64
        $region36: #{tpu_custom_call.1} parent=27 // pred_fallthru
          _
        %s192 = sand.u32 %s33, 1
        %s193 = scalar_lea.sflag [#allocation3], %s192
        %s194 = sand.u32 %s33, 1
        %s195 = smul.addr %s194, 16
        %s196 = scalar_lea.vmem [#allocation2], %s195
        %p197 = pneg %p46
        %p198 = pneg %p43
        %p199 = pneg %p67
        %p200 = pneg %p64
        %p201 = pneg %p93
        %p202 = pneg %p90
        %s203 = sand.u32 %s80, 1
        %s204 = scalar_lea.sflag [#allocation4], %s203
        %s205 = sand.u32 %s80, 1
        %s206 = smul.addr %s205, 16
        %s207 = scalar_lea.vmem [#allocation7], %s206
        %p208 = pneg %p119
        %p209 = pneg %p116
        %s210 = sand.u32 %s106, 1
        %s211 = scalar_lea.sflag [#allocation9], %s210
        %s212 = sand.u32 %s106, 1
        %s213 = scalar_lea.vmem [#allocation8], %s212
        %v214 = vld [vmem:[%s181] sm:$0xff]
        %v215 = vld [vmem:[%s181 + $0x8] sm:$0xff]
        %v216 = vld [vmem:[#allocation5] ss:$2 sm:$0x3]
        %s217 = scalar_lea.vmem [#allocation5], 1
        %v218 = vld [vmem:[%s217] ss:$2 sm:$0x3]
        %221 = vrot.lane.b32.xlu0 %v214, 127
        %v222 = vpop.permute.xlu0 %221
        %223 = vrot.lane.b32.xlu0 %v215, 127
        %v224 = vpop.permute.xlu0 %223
        %vm225 = vcmask 1039360
        %v226 = vsel %vm225, %v222, %v224
        %v229 = vsel %vm225, %v224, 0.0
        %v231 = vperm.slane %v216, 0
        %v232 = vperm.slane %v216, 1
        %v235 = vmul.f32 %v226, %v231
        %v236 = vmul.f32 %v229, %v232
        %237 = vrot.lane.b32.xlu0 %v214, 1
        %v238 = vpop.permute.xlu0 %237
        %239 = vrot.lane.b32.xlu0 %v215, 1
        %v240 = vpop.permute.xlu0 %239
        %vm241 = vcmask 7168
        %v242 = vsel %vm241, %v238, %v240
        %v245 = vsel %vm241, 0.0, %v238
        %v247 = vperm.slane %v218, 0
        %v248 = vperm.slane %v218, 1
        %v251 = vmul.f32 %v245, %v247
        %v252 = vmul.f32 %v242, %v248
        %v253 = vadd.f32 %v214, %v235
        %v254 = vadd.f32 %v215, %v236
        %v255 = vadd.f32 %v253, %v251
        %v256 = vadd.f32 %v254, %v252
        %259 = vrot.lane.b32.xlu0 %v255, 112
        %v260 = vpop.permute.xlu0 %259
        %261 = vrot.lane.b32.xlu0 %v256, 112
        %v262 = vpop.permute.xlu0 %261
        %vm263 = vcmask 916480
        %v264 = vsel %vm263, %v260, %v262
        %v267 = vsel %vm263, %v262, 0.0
        %268 = vrot.lane.b32.xlu0 %v255, 16
        %v269 = vpop.permute.xlu0 %268
        %270 = vrot.lane.b32.xlu0 %v256, 16
        %v271 = vpop.permute.xlu0 %270
        %vm272 = vcmask 130048
        %v273 = vsel %vm272, %v269, %v271
        %v276 = vsel %vm272, 0.0, %v269
        %v277 = vadd.f32 %v255, %v264
        %v278 = vadd.f32 %v256, %v267
        %v279 = vadd.f32 %v277, %v276
        %v280 = vadd.f32 %v278, %v273
        %v281 = vmul.f32 %v214, 100.0
        %v282 = vmul.f32 %v215, 100.0
        %v283 = vsub.f32 %v279, %v214
        %v284 = vsub.f32 %v280, %v215
        %v285 = vmul.f32 %v283, 0.125
        %v286 = vmul.f32 %v284, 0.125
        %v287 = vadd.f32 %v281, %v285
        %v288 = vadd.f32 %v282, %v286
        %289 = vst [vmem:[%s207] sm:$0xff] %v287
        %290 = vst [vmem:[%s207 + $0x8] sm:$0xff] %v288
        %v291 = vmin.f32 %v287, %v288
        %292 = vmin.xlane.f32.xlu0 %v291
        %v293 = vpop.xlane.xlu0 %292
        %v294 = vrot.slane %v293, 4
        %v295 = vmin.f32 %v293, %v294
        %v296 = vrot.slane %v295, 2
        %v297 = vmin.f32 %v295, %v296
        %v298 = vrot.slane %v297, 1
        %v299 = vmin.f32 %v297, %v298
        %v300 = vmax.f32 %v287, %v288
        %301 = vmax.xlane.f32.xlu0 %v300
        %v302 = vpop.xlane.xlu0 %301
        %v303 = vrot.slane %v302, 4
        %v304 = vmax.f32 %v302, %v303
        %v305 = vrot.slane %v304, 2
        %v306 = vmax.f32 %v304, %v305
        %v307 = vrot.slane %v306, 1
        %v308 = vmax.f32 %v306, %v307
        %v309 = vsel %vm241, %v299, %v308
        %vm310 = vcmask 8192
        %311 = vst.msk [vmem:[%s213] sm:$0x1] %vm310, %v309
        %s312 = sand.u32 %s80, 1
        %s313 = scalar_lea.sflag [#allocation4], %s312
        %s314 = sand.u32 %s80, 1
        %s315 = smul.addr %s314, 16
        %s316 = scalar_lea.vmem [#allocation7], %s315
        %s317 = sand.u32 %s106, 1
        %s318 = scalar_lea.sflag [#allocation9], %s317
        %s319 = sand.u32 %s106, 1
        %s320 = scalar_lea.vmem [#allocation8], %s319
        // Predicated region
        $region37: #{tpu_custom_call.1} parent=27 // pred_check
          %p321 = pneg %p90
        $region38: #{tpu_custom_call.1} parent=27 // pred_check_branch
          %323 = sbr.rel (%p321) target = $region40
        $region39: #{tpu_custom_call.1} parent=27 // pred_region
          %325 = vsyncadd %s313, 0
          %s326 = smul.addr %s25, 2
          %s327 = smul.addr %s326, 8
          %s328 = scalar_lea.hbm %s2, %s327
          %s330 = sshll.u32 %s316, 4
          %s331 = int_to_ptr.vmem [resolvable:$true] %s330
          %s332 = sshll.u32 %s328, 4
          %s333 = int_to_ptr.hbm [resolvable:$true] %s332
          %335 = dma.vmem_to_hbm [thread:$0]  %s331, 256, %s333, %s313
        $region40: #{tpu_custom_call.1} parent=27 // pred_fallthru
          _
        // Predicated region
        $region41: #{tpu_custom_call.1} parent=27 // pred_check
          %p336 = pneg %p116
        $region42: #{tpu_custom_call.1} parent=27 // pred_check_branch
          %338 = sbr.rel (%p336) target = $region44
        $region43: #{tpu_custom_call.1} parent=27 // pred_region
          %340 = vsyncadd %s318, 0
          %s341 = scalar_lea.hbm %s3, %s25
          %s343 = sshll.u32 %s320, 4
          %s344 = int_to_ptr.vmem [resolvable:$true] %s343
          %s345 = sshll.u32 %s341, 4
          %s346 = int_to_ptr.hbm [resolvable:$true] %s345
          %348 = dma.vmem_to_hbm [thread:$0]  %s344, 16, %s346, %s318
        $region44: #{tpu_custom_call.1} parent=27 // pred_fallthru
          _
      $region28: #{tpu_custom_call.1} parent=5 // pred_fallthru
        _
      %p349 = scmp.le.s32.totalorder 2, %s20
      // Predicated region
      $region45: #{tpu_custom_call.1} parent=5 // pred_check
        %p350 = pneg %p349
      $region46: #{tpu_custom_call.1} parent=5 // pred_check_branch
        %352 = sbr.rel (%p350) target = $region48
      $region47: #{tpu_custom_call.1} parent=5 // pred_region
        %s353 = ssub.s32 %s20, 2
        // Predicated region
        $region49: #{tpu_custom_call.1} parent=47 // pred_check
          %p354 = pneg %p96
        $region50: #{tpu_custom_call.1} parent=47 // pred_check_branch
          %356 = sbr.rel (%p354) target = $region52
        $region51: #{tpu_custom_call.1} parent=47 // pred_region
          %s357 = sand.u32 %s81, 1
          %s358 = scalar_lea.sflag [#allocation4], %s357
          %s359 = sand.u32 %s81, 1
          %s360 = smul.addr %s359, 16
          %s361 = scalar_lea.vmem [#allocation7], %s360
          %363 = dma.done %s358, 256
        $region52: #{tpu_custom_call.1} parent=47 // pred_fallthru
          _
        // Predicated region
        $region53: #{tpu_custom_call.1} parent=47 // pred_check
          %p364 = pneg %p122
        $region54: #{tpu_custom_call.1} parent=47 // pred_check_branch
          %366 = sbr.rel (%p364) target = $region56
        $region55: #{tpu_custom_call.1} parent=47 // pred_region
          %s367 = sand.u32 %s107, 1
          %s368 = scalar_lea.sflag [#allocation9], %s367
          %s369 = sand.u32 %s107, 1
          %s370 = scalar_lea.vmem [#allocation8], %s369
          %372 = dma.done %s368, 16
        $region56: #{tpu_custom_call.1} parent=47 // pred_fallthru
          _
      $region48: #{tpu_custom_call.1} parent=5 // pred_fallthru
        _
    $region6: #{tpu_custom_call.1} parent=1 // loop_footer
      %s24 = sadd.s32 1, %s20
    $region7: #{tpu_custom_call.1} parent=1 // loop_footer_branch
      %19 = sbr.rel target = $region3
    $region8: #{tpu_custom_call.1} parent=1 // loop_exit
      _
    %373 = vsyncpa [#allocation3], 1
    %s374 = scalar_lea.sflag [#allocation3], 1
    %375 = vsyncpa %s374, 1
    %376 = vsyncpa [#allocation6], 1
    %377 = vsyncpa [#allocation4], 1
    %s378 = scalar_lea.sflag [#allocation4], 1
    %379 = vsyncpa %s378, 1
    %380 = vsyncpa [#allocation9], 1
    %s381 = scalar_lea.sflag [#allocation9], 1
    %382 = vsyncpa %s381, 1

</llo_original>
